<compile_context>
chip_gen: v6e
topology: v6e:2x2x1
jax: 0.10.0
libtpu: 0.0.40
codegen_flags: <defaults>
</compile_context>

<pallas_src>
import functools

import jax
import jax.numpy as jnp
from jax import lax
from jax.experimental import pallas as pl
from jax.experimental.pallas import tpu as pltpu

_EPS = 1e-12  # matches F.normalize eps default (clamped on sumsq as eps**2 here)


def _pcl_kernel(q_ref, p_ref, n_ref, o_ref, *, temperature):
    q = q_ref[...].astype(jnp.float32)    # (B, S, D)
    p = p_ref[...].astype(jnp.float32)    # (B, S, D)
    n = n_ref[...].astype(jnp.float32)    # (B, K, D)

    inv_t = 1.0 / temperature

    def l2norm(x, scale=1.0):
        sumsq = jnp.sum(x * x, axis=-1, keepdims=True)
        inv = lax.rsqrt(jnp.maximum(sumsq, _EPS * _EPS))   # EUP rsqrt
        return x * (inv * scale)

    # Fold 1/temperature into q's scale (logits are linear in q).
    qn = l2norm(q, inv_t)                 # (B, S, D)
    pn = l2norm(p)                        # (B, S, D)
    nn_ = l2norm(n)                       # (B, K, D)

    B, S, _ = qn.shape
    K = nn_.shape[1]

    # positive logits -> logits column 0
    pos = jnp.sum(qn * pn, axis=-1)       # (B, S)

    # logsumexp over the class dim (S, axis=1).  Logits are cosine similarities
    # scaled by inv_t, hence bounded by +/- inv_t: a constant shift keeps exp()
    # in a safe f32 range with no XLU max-reduce.  Static fallback to the
    # max-based form if the bound is too large for a constant shift.
    use_const_shift = inv_t <= 30.0

    def lse_cols(v):                       # v: (B, S) -> (B, 1)
        if use_const_shift:
            return jnp.log(jnp.sum(jnp.exp(v - inv_t), axis=1, keepdims=True)) + inv_t
        m = jnp.max(v, axis=1, keepdims=True)
        return m + jnp.log(jnp.sum(jnp.exp(v - m), axis=1, keepdims=True))

    # Per logits column j: loss_j = logsumexp_over_S(col_j) - col_j[target_j]
    # Column 0 (positive logits): target class index 1.
    total = jnp.sum(lse_cols(pos) - pos[:, 1:2])

    # Columns 1..K (negative logits): target class index 0.  Statically
    # unrolled over K to avoid a padded (B, S, K, D) intermediate — each step
    # is a cheap sublane-broadcast multiply + lane reduce in (B, S, D) layout.
    for k in range(K):
        neg_k = jnp.sum(qn * nn_[:, k:k + 1, :], axis=-1)   # (B, S)
        total = total + jnp.sum(lse_cols(neg_k) - neg_k[:, 0:1])

    loss = 0.2 * total / (B * (1 + K))     # mean over B*(1+K) elements, * 0.2
    o_ref[0, 0] = loss


def prototype_contrastive_loss(query, positive_key, negative_keys, temperature=0.1):
    """Pallas implementation of PrototypeContrastiveLearning.forward."""
    if negative_keys is None:
        return jnp.zeros((), jnp.float32)

    B, S, D = query.shape
    K = negative_keys.shape[1]

    # Advisory cost hint: kernel is ~free, let XLA overlap the custom call.
    n_rows = B * (2 * S + K)
    flops = 2 * n_rows * D * 3 + 2 * B * S * (1 + K) * D
    bytes_accessed = 4 * (query.size + positive_key.size + negative_keys.size) + 4
    transcendentals = n_rows + B * S * (1 + K) + B * (1 + K)

    out = pl.pallas_call(
        functools.partial(_pcl_kernel, temperature=float(temperature)),
        out_shape=jax.ShapeDtypeStruct((1, 1), jnp.float32),
        in_specs=[
            pl.BlockSpec(memory_space=pltpu.MemorySpace.VMEM),  # query
            pl.BlockSpec(memory_space=pltpu.MemorySpace.VMEM),  # positive_key
            pl.BlockSpec(memory_space=pltpu.MemorySpace.VMEM),  # negative_keys
        ],
        out_specs=pl.BlockSpec(memory_space=pltpu.MemorySpace.SMEM),
        cost_estimate=pl.CostEstimate(
            flops=int(flops),
            transcendentals=int(transcendentals),
            bytes_accessed=int(bytes_accessed)),
    )(query, positive_key, negative_keys)
    return out[0, 0]


def _reference_loss(query, positive_key, negative_keys, temperature=0.1):
    """Pure-JAX replica of the PyTorch forward, for correctness checking.

    (This is also the preferred form when the loss stays a standalone op in a
    training graph — XLA fuses it for free and there is no custom-call launch.)
    """
    def norm(x):
        return x / jnp.maximum(jnp.linalg.norm(x, axis=-1, keepdims=True), _EPS)

    q, p, n = norm(query), norm(positive_key), norm(negative_keys)
    pos_logit = jnp.sum(q * p, axis=2, keepdims=True)                 # (B, S, 1)
    neg_logits = jnp.matmul(q, jnp.swapaxes(n, -1, -2))               # (B, S, K)
    logits = jnp.concatenate([pos_logit, neg_logits], axis=2) / temperature
    B, S, C = logits.shape
    labels = jnp.zeros((B, C), jnp.int32).at[:, 0].set(1)             # class dim = S
    logp = jax.nn.log_softmax(logits, axis=1)                         # softmax over S
    picked = jnp.take_along_axis(logp, labels[:, None, :], axis=1)[:, 0, :]
    return 0.2 * jnp.mean(-picked)


if __name__ == "__main__":
    # B=2 and K=4 are fixed by the module's hard-coded labels = zeros(2, 5).
    B, S, D, K = 2, 8, 32, 4
    key = jax.random.PRNGKey(0)
    k1, k2, k3 = jax.random.split(key, 3)
    query = jax.random.normal(k1, (B, S, D), jnp.float32)
    positive_key = jax.random.normal(k2, (B, S, D), jnp.float32)
    negative_keys = jax.random.normal(k3, (B, K, D), jnp.float32)

    loss = jax.block_until_ready(
        prototype_contrastive_loss(query, positive_key, negative_keys))
    ref = jax.block_until_ready(
        _reference_loss(query, positive_key, negative_keys))
    assert jnp.allclose(loss, ref, rtol=1e-5, atol=1e-5), (loss, ref)

    print("KERNEL_OK")
</pallas_src>

<mosaic_0001>
module attributes {stable_mosaic.version = 11 : i64} {
  func.func @_pcl_kernel(%arg0: memref<2x8x32xf32, #tpu.memory_space<vmem>>, %arg1: memref<2x8x32xf32, #tpu.memory_space<vmem>>, %arg2: memref<2x4x32xf32, #tpu.memory_space<vmem>>, %arg3: memref<1x1xf32, #tpu.memory_space<smem>>) attributes {dimension_semantics = [], scalar_prefetch = 0 : i64, scratch_operands = 0 : i64, tpu.core_type = #tpu.core_type<tc>} {
    %c0 = arith.constant 0 : index
    %c0_0 = arith.constant 0 : index
    %c0_1 = arith.constant 0 : index
    %0 = vector.load %arg0[%c0, %c0_0, %c0_1] : memref<2x8x32xf32, #tpu.memory_space<vmem>>, vector<2x8x32xf32>
    %c0_2 = arith.constant 0 : index
    %c0_3 = arith.constant 0 : index
    %c0_4 = arith.constant 0 : index
    %1 = vector.load %arg1[%c0_2, %c0_3, %c0_4] : memref<2x8x32xf32, #tpu.memory_space<vmem>>, vector<2x8x32xf32>
    %c0_5 = arith.constant 0 : index
    %c0_6 = arith.constant 0 : index
    %c0_7 = arith.constant 0 : index
    %2 = vector.load %arg2[%c0_5, %c0_6, %c0_7] : memref<2x4x32xf32, #tpu.memory_space<vmem>>, vector<2x4x32xf32>
    %3 = arith.mulf %0, %0 : vector<2x8x32xf32>
    %cst = arith.constant dense<0.000000e+00> : vector<2x8xf32>
    %4 = vector.multi_reduction <add>, %3, %cst [2] : vector<2x8x32xf32> to vector<2x8xf32>
    %5 = vector.shape_cast %4 : vector<2x8xf32> to vector<2x8x1xf32>
    %cst_8 = arith.constant 1.000000e-24 : f32
    %6 = vector.broadcast %cst_8 : f32 to vector<2x8x1xf32>
    %7 = arith.maximumf %5, %6 : vector<2x8x1xf32>
    %8 = math.rsqrt %7 : vector<2x8x1xf32>
    %cst_9 = arith.constant 1.000000e+01 : f32
    %9 = vector.broadcast %cst_9 : f32 to vector<2x8x1xf32>
    %10 = arith.mulf %8, %9 : vector<2x8x1xf32>
    %11 = vector.broadcast %10 : vector<2x8x1xf32> to vector<2x8x32xf32>
    %12 = arith.mulf %0, %11 : vector<2x8x32xf32>
    %13 = arith.mulf %1, %1 : vector<2x8x32xf32>
    %cst_10 = arith.constant dense<0.000000e+00> : vector<2x8xf32>
    %14 = vector.multi_reduction <add>, %13, %cst_10 [2] : vector<2x8x32xf32> to vector<2x8xf32>
    %15 = vector.shape_cast %14 : vector<2x8xf32> to vector<2x8x1xf32>
    %cst_11 = arith.constant 1.000000e-24 : f32
    %16 = vector.broadcast %cst_11 : f32 to vector<2x8x1xf32>
    %17 = arith.maximumf %15, %16 : vector<2x8x1xf32>
    %18 = math.rsqrt %17 : vector<2x8x1xf32>
    %cst_12 = arith.constant 1.000000e+00 : f32
    %19 = vector.broadcast %cst_12 : f32 to vector<2x8x1xf32>
    %20 = arith.mulf %18, %19 : vector<2x8x1xf32>
    %21 = vector.broadcast %20 : vector<2x8x1xf32> to vector<2x8x32xf32>
    %22 = arith.mulf %1, %21 : vector<2x8x32xf32>
    %23 = arith.mulf %2, %2 : vector<2x4x32xf32>
    %cst_13 = arith.constant dense<0.000000e+00> : vector<2x4xf32>
    %24 = vector.multi_reduction <add>, %23, %cst_13 [2] : vector<2x4x32xf32> to vector<2x4xf32>
    %25 = vector.shape_cast %24 : vector<2x4xf32> to vector<2x4x1xf32>
    %cst_14 = arith.constant 1.000000e-24 : f32
    %26 = vector.broadcast %cst_14 : f32 to vector<2x4x1xf32>
    %27 = arith.maximumf %25, %26 : vector<2x4x1xf32>
    %28 = math.rsqrt %27 : vector<2x4x1xf32>
    %cst_15 = arith.constant 1.000000e+00 : f32
    %29 = vector.broadcast %cst_15 : f32 to vector<2x4x1xf32>
    %30 = arith.mulf %28, %29 : vector<2x4x1xf32>
    %31 = vector.broadcast %30 : vector<2x4x1xf32> to vector<2x4x32xf32>
    %32 = arith.mulf %2, %31 : vector<2x4x32xf32>
    %33 = arith.mulf %12, %22 : vector<2x8x32xf32>
    %cst_16 = arith.constant dense<0.000000e+00> : vector<2x8xf32>
    %34 = vector.multi_reduction <add>, %33, %cst_16 [2] : vector<2x8x32xf32> to vector<2x8xf32>
    %cst_17 = arith.constant 1.000000e+01 : f32
    %35 = vector.broadcast %cst_17 : f32 to vector<2x8xf32>
    %36 = arith.subf %34, %35 : vector<2x8xf32>
    %37 = math.exp %36 : vector<2x8xf32>
    %cst_18 = arith.constant dense<0.000000e+00> : vector<2xf32>
    %38 = vector.multi_reduction <add>, %37, %cst_18 [1] : vector<2x8xf32> to vector<2xf32>
    %39 = vector.shape_cast %38 : vector<2xf32> to vector<2x1xf32>
    %40 = math.log %39 : vector<2x1xf32>
    %cst_19 = arith.constant 1.000000e+01 : f32
    %41 = vector.broadcast %cst_19 : f32 to vector<2x1xf32>
    %42 = arith.addf %40, %41 : vector<2x1xf32>
    %43 = vector.extract_strided_slice %34 {offsets = [0, 1], sizes = [2, 1], strides = [1, 1]} : vector<2x8xf32> to vector<2x1xf32>
    %44 = arith.subf %42, %43 : vector<2x1xf32>
    %45 = vector.shape_cast %44 : vector<2x1xf32> to vector<1x2x1xf32>
    %cst_20 = arith.constant dense<0.000000e+00> : vector<1xf32>
    %46 = vector.multi_reduction <add>, %45, %cst_20 [1, 2] : vector<1x2x1xf32> to vector<1xf32>
    %47 = vector.shape_cast %46 : vector<1xf32> to vector<1x1x1xf32>
    %48 = vector.extract %47[0, 0, 0] : f32 from vector<1x1x1xf32>
    %49 = vector.extract_strided_slice %32 {offsets = [0, 0, 0], sizes = [2, 1, 32], strides = [1, 1, 1]} : vector<2x4x32xf32> to vector<2x1x32xf32>
    %50 = vector.broadcast %49 : vector<2x1x32xf32> to vector<2x8x32xf32>
    %51 = arith.mulf %12, %50 : vector<2x8x32xf32>
    %cst_21 = arith.constant dense<0.000000e+00> : vector<2x8xf32>
    %52 = vector.multi_reduction <add>, %51, %cst_21 [2] : vector<2x8x32xf32> to vector<2x8xf32>
    %cst_22 = arith.constant 1.000000e+01 : f32
    %53 = vector.broadcast %cst_22 : f32 to vector<2x8xf32>
    %54 = arith.subf %52, %53 : vector<2x8xf32>
    %55 = math.exp %54 : vector<2x8xf32>
    %cst_23 = arith.constant dense<0.000000e+00> : vector<2xf32>
    %56 = vector.multi_reduction <add>, %55, %cst_23 [1] : vector<2x8xf32> to vector<2xf32>
    %57 = vector.shape_cast %56 : vector<2xf32> to vector<2x1xf32>
    %58 = math.log %57 : vector<2x1xf32>
    %cst_24 = arith.constant 1.000000e+01 : f32
    %59 = vector.broadcast %cst_24 : f32 to vector<2x1xf32>
    %60 = arith.addf %58, %59 : vector<2x1xf32>
    %61 = vector.extract_strided_slice %52 {offsets = [0, 0], sizes = [2, 1], strides = [1, 1]} : vector<2x8xf32> to vector<2x1xf32>
    %62 = arith.subf %60, %61 : vector<2x1xf32>
    %63 = vector.shape_cast %62 : vector<2x1xf32> to vector<1x2x1xf32>
    %cst_25 = arith.constant dense<0.000000e+00> : vector<1xf32>
    %64 = vector.multi_reduction <add>, %63, %cst_25 [1, 2] : vector<1x2x1xf32> to vector<1xf32>
    %65 = vector.shape_cast %64 : vector<1xf32> to vector<1x1x1xf32>
    %66 = vector.extract %65[0, 0, 0] : f32 from vector<1x1x1xf32>
    %67 = arith.addf %48, %66 : f32
    %68 = vector.extract_strided_slice %32 {offsets = [0, 1, 0], sizes = [2, 1, 32], strides = [1, 1, 1]} : vector<2x4x32xf32> to vector<2x1x32xf32>
    %69 = vector.broadcast %68 : vector<2x1x32xf32> to vector<2x8x32xf32>
    %70 = arith.mulf %12, %69 : vector<2x8x32xf32>
    %cst_26 = arith.constant dense<0.000000e+00> : vector<2x8xf32>
    %71 = vector.multi_reduction <add>, %70, %cst_26 [2] : vector<2x8x32xf32> to vector<2x8xf32>
    %cst_27 = arith.constant 1.000000e+01 : f32
    %72 = vector.broadcast %cst_27 : f32 to vector<2x8xf32>
    %73 = arith.subf %71, %72 : vector<2x8xf32>
    %74 = math.exp %73 : vector<2x8xf32>
    %cst_28 = arith.constant dense<0.000000e+00> : vector<2xf32>
    %75 = vector.multi_reduction <add>, %74, %cst_28 [1] : vector<2x8xf32> to vector<2xf32>
    %76 = vector.shape_cast %75 : vector<2xf32> to vector<2x1xf32>
    %77 = math.log %76 : vector<2x1xf32>
    %cst_29 = arith.constant 1.000000e+01 : f32
    %78 = vector.broadcast %cst_29 : f32 to vector<2x1xf32>
    %79 = arith.addf %77, %78 : vector<2x1xf32>
    %80 = vector.extract_strided_slice %71 {offsets = [0, 0], sizes = [2, 1], strides = [1, 1]} : vector<2x8xf32> to vector<2x1xf32>
    %81 = arith.subf %79, %80 : vector<2x1xf32>
    %82 = vector.shape_cast %81 : vector<2x1xf32> to vector<1x2x1xf32>
    %cst_30 = arith.constant dense<0.000000e+00> : vector<1xf32>
    %83 = vector.multi_reduction <add>, %82, %cst_30 [1, 2] : vector<1x2x1xf32> to vector<1xf32>
    %84 = vector.shape_cast %83 : vector<1xf32> to vector<1x1x1xf32>
    %85 = vector.extract %84[0, 0, 0] : f32 from vector<1x1x1xf32>
    %86 = arith.addf %67, %85 : f32
    %87 = vector.extract_strided_slice %32 {offsets = [0, 2, 0], sizes = [2, 1, 32], strides = [1, 1, 1]} : vector<2x4x32xf32> to vector<2x1x32xf32>
    %88 = vector.broadcast %87 : vector<2x1x32xf32> to vector<2x8x32xf32>
    %89 = arith.mulf %12, %88 : vector<2x8x32xf32>
    %cst_31 = arith.constant dense<0.000000e+00> : vector<2x8xf32>
    %90 = vector.multi_reduction <add>, %89, %cst_31 [2] : vector<2x8x32xf32> to vector<2x8xf32>
    %cst_32 = arith.constant 1.000000e+01 : f32
    %91 = vector.broadcast %cst_32 : f32 to vector<2x8xf32>
    %92 = arith.subf %90, %91 : vector<2x8xf32>
    %93 = math.exp %92 : vector<2x8xf32>
    %cst_33 = arith.constant dense<0.000000e+00> : vector<2xf32>
    %94 = vector.multi_reduction <add>, %93, %cst_33 [1] : vector<2x8xf32> to vector<2xf32>
    %95 = vector.shape_cast %94 : vector<2xf32> to vector<2x1xf32>
    %96 = math.log %95 : vector<2x1xf32>
    %cst_34 = arith.constant 1.000000e+01 : f32
    %97 = vector.broadcast %cst_34 : f32 to vector<2x1xf32>
    %98 = arith.addf %96, %97 : vector<2x1xf32>
    %99 = vector.extract_strided_slice %90 {offsets = [0, 0], sizes = [2, 1], strides = [1, 1]} : vector<2x8xf32> to vector<2x1xf32>
    %100 = arith.subf %98, %99 : vector<2x1xf32>
    %101 = vector.shape_cast %100 : vector<2x1xf32> to vector<1x2x1xf32>
    %cst_35 = arith.constant dense<0.000000e+00> : vector<1xf32>
    %102 = vector.multi_reduction <add>, %101, %cst_35 [1, 2] : vector<1x2x1xf32> to vector<1xf32>
    %103 = vector.shape_cast %102 : vector<1xf32> to vector<1x1x1xf32>
    %104 = vector.extract %103[0, 0, 0] : f32 from vector<1x1x1xf32>
    %105 = arith.addf %86, %104 : f32
    %106 = vector.extract_strided_slice %32 {offsets = [0, 3, 0], sizes = [2, 1, 32], strides = [1, 1, 1]} : vector<2x4x32xf32> to vector<2x1x32xf32>
    %107 = vector.broadcast %106 : vector<2x1x32xf32> to vector<2x8x32xf32>
    %108 = arith.mulf %12, %107 : vector<2x8x32xf32>
    %cst_36 = arith.constant dense<0.000000e+00> : vector<2x8xf32>
    %109 = vector.multi_reduction <add>, %108, %cst_36 [2] : vector<2x8x32xf32> to vector<2x8xf32>
    %cst_37 = arith.constant 1.000000e+01 : f32
    %110 = vector.broadcast %cst_37 : f32 to vector<2x8xf32>
    %111 = arith.subf %109, %110 : vector<2x8xf32>
    %112 = math.exp %111 : vector<2x8xf32>
    %cst_38 = arith.constant dense<0.000000e+00> : vector<2xf32>
    %113 = vector.multi_reduction <add>, %112, %cst_38 [1] : vector<2x8xf32> to vector<2xf32>
    %114 = vector.shape_cast %113 : vector<2xf32> to vector<2x1xf32>
    %115 = math.log %114 : vector<2x1xf32>
    %cst_39 = arith.constant 1.000000e+01 : f32
    %116 = vector.broadcast %cst_39 : f32 to vector<2x1xf32>
    %117 = arith.addf %115, %116 : vector<2x1xf32>
    %118 = vector.extract_strided_slice %109 {offsets = [0, 0], sizes = [2, 1], strides = [1, 1]} : vector<2x8xf32> to vector<2x1xf32>
    %119 = arith.subf %117, %118 : vector<2x1xf32>
    %120 = vector.shape_cast %119 : vector<2x1xf32> to vector<1x2x1xf32>
    %cst_40 = arith.constant dense<0.000000e+00> : vector<1xf32>
    %121 = vector.multi_reduction <add>, %120, %cst_40 [1, 2] : vector<1x2x1xf32> to vector<1xf32>
    %122 = vector.shape_cast %121 : vector<1xf32> to vector<1x1x1xf32>
    %123 = vector.extract %122[0, 0, 0] : f32 from vector<1x1x1xf32>
    %124 = arith.addf %105, %123 : f32
    %cst_41 = arith.constant 2.000000e-01 : f32
    %125 = arith.mulf %cst_41, %124 : f32
    %cst_42 = arith.constant 1.000000e+01 : f32
    %126 = arith.divf %125, %cst_42 : f32
    %c0_43 = arith.constant 0 : index
    %c0_44 = arith.constant 0 : index
    %127 = memref.load %arg3[%c0_43, %c0_44] : memref<1x1xf32, #tpu.memory_space<smem>>
    memref.store %126, %arg3[%c0_43, %c0_44] : memref<1x1xf32, #tpu.memory_space<smem>>
    return
  }
}

</mosaic_0001>

<llo_original>
// kernel: tpu_custom_call.1
$region0: #{tpu_custom_call.1}
  #allocation0 [shape = 'u32[]', space=smem, size = 0x4, offset = 0x4, fixed_abs, tag = 'smem constant byte address 0x4 - core index']
  #allocation1 [shape = 'u32[144,128]{1,0:T(1,128)}', space=vmem, size = 0x12000, scoped, tag = 'internal scratch']
  %s0 = inlined_call_operand.hbm [shape: f32[2,8,32], index: 0, kind: input, shape index: {}]
  %s1 = inlined_call_operand.hbm [shape: f32[2,8,32], index: 1, kind: input, shape index: {}]
  %s2 = inlined_call_operand.hbm [shape: f32[2,4,32], index: 2, kind: input, shape index: {}]
  %s3 = inlined_call_operand.hbm [shape: f32[1,1], index: 3, kind: output, shape index: {}]
  %s4 = sld [smem:[#allocation0]]
  $region34: #{tpu_custom_call.1} parent=0
    _
  %s6 = ssub.s32 1, %s4
  %s7 = scalar_select 0, %s6, %s4
  $region1: #{tpu_custom_call.1} parent=0
    #allocation2 [shape = 'u8[8192]{0}', space=vmem, size = 0x2000, scoped, tag = 'input window, operand 0, single buffered']
    #allocation3 [shape = 's32[1]{0}', space=sflag, size = 0x4, scoped, tag = 'scoped memory for tpu_custom_call.1']
    #allocation4 [shape = 's32[1]{0}', space=sflag, size = 0x4, scoped, tag = 'scoped memory for tpu_custom_call.1']
    #allocation5 [shape = 'u8[8192]{0}', space=vmem, size = 0x2000, scoped, tag = 'input window, operand 1, single buffered']
    #allocation6 [shape = 's32[1]{0}', space=sflag, size = 0x4, scoped, tag = 'scoped memory for tpu_custom_call.1']
    #allocation7 [shape = 'u8[4096]{0}', space=vmem, size = 0x1000, scoped, tag = 'input window, operand 2, single buffered']
    #allocation8 [shape = 'u8[512]{0}', space=smem, size = 0x200, scoped, tag = 'output window, operand 0, single buffered']
    %8 = vsyncpa [#allocation3], 0
    %9 = vsyncpa [#allocation6], 0
    %10 = vsyncpa [#allocation4], 0
    // Predicated region
    $region2: #{tpu_custom_call.1} parent=1 // pred_check
      _
    $region3: #{tpu_custom_call.1} parent=1 // pred_check_branch
      %12 = sbr.rel (0) target = $region5
    $region4: #{tpu_custom_call.1} parent=1 // pred_region
      %s14 = ssub.s32 256, 256
      %15 = vsyncadd [#allocation3], %s14
      %s16 = sshll.u32 [#allocation2], 4
      %s17 = int_to_ptr.vmem [resolvable:$true] %s16
      %22 = dma.hbm_to_vmem [thread:$0]  %s0, 256, %s17, [#allocation3], 128, 128, 8
    $region5: #{tpu_custom_call.1} parent=1 // pred_fallthru
      _
    // Predicated region
    $region6: #{tpu_custom_call.1} parent=1 // pred_check
      _
    $region7: #{tpu_custom_call.1} parent=1 // pred_check_branch
      %24 = sbr.rel (0) target = $region9
    $region8: #{tpu_custom_call.1} parent=1 // pred_region
      %s26 = ssub.s32 256, 256
      %27 = vsyncadd [#allocation6], %s26
      %s28 = sshll.u32 [#allocation5], 4
      %s29 = int_to_ptr.vmem [resolvable:$true] %s28
      %34 = dma.hbm_to_vmem [thread:$0]  %s1, 256, %s29, [#allocation6], 128, 128, 8
    $region9: #{tpu_custom_call.1} parent=1 // pred_fallthru
      _
    // Predicated region
    $region10: #{tpu_custom_call.1} parent=1 // pred_check
      _
    $region11: #{tpu_custom_call.1} parent=1 // pred_check_branch
      %36 = sbr.rel (0) target = $region13
    $region12: #{tpu_custom_call.1} parent=1 // pred_region
      %s38 = ssub.s32 128, 128
      %39 = vsyncadd [#allocation6], %s38
      %s40 = sshll.u32 [#allocation7], 4
      %s41 = int_to_ptr.vmem [resolvable:$true] %s40
      %46 = dma.hbm_to_vmem [thread:$0]  %s2, 128, %s41, [#allocation6], 64, 64, 4
    $region13: #{tpu_custom_call.1} parent=1 // pred_fallthru
      _
    // Predicated region
    $region14: #{tpu_custom_call.1} parent=1 // pred_check
      _
    $region15: #{tpu_custom_call.1} parent=1 // pred_check_branch
      %48 = sbr.rel (0) target = $region17
    $region16: #{tpu_custom_call.1} parent=1 // pred_region
      %49 = dma.done [#allocation3], 256
    $region17: #{tpu_custom_call.1} parent=1 // pred_fallthru
      _
    // Predicated region
    $region18: #{tpu_custom_call.1} parent=1 // pred_check
      _
    $region19: #{tpu_custom_call.1} parent=1 // pred_check_branch
      %51 = sbr.rel (0) target = $region21
    $region20: #{tpu_custom_call.1} parent=1 // pred_region
      %52 = dma.done [#allocation6], 256
    $region21: #{tpu_custom_call.1} parent=1 // pred_fallthru
      _
    // Predicated region
    $region22: #{tpu_custom_call.1} parent=1 // pred_check
      _
    $region23: #{tpu_custom_call.1} parent=1 // pred_check_branch
      %54 = sbr.rel (0) target = $region25
    $region24: #{tpu_custom_call.1} parent=1 // pred_region
      %55 = dma.done [#allocation6], 128
    $region25: #{tpu_custom_call.1} parent=1 // pred_fallthru
      _
    %v56 = vld [vmem:[#allocation2] sm:$0xff]
    %v57 = vld [vmem:[#allocation2 + $0x8] sm:$0xff]
    %v58 = vld [vmem:[#allocation5] sm:$0xff]
    %v59 = vld [vmem:[#allocation5 + $0x8] sm:$0xff]
    %v60 = vld [vmem:[#allocation7] sm:$0xf]
    %v61 = vld [vmem:[#allocation7 + $0x4] sm:$0xf]
    %v62 = vmul.f32 %v56, %v56
    %v63 = vmul.f32 %v57, %v57
    %vm64 = vcmask 261120
    %v65 = vsel %vm64, %v62, 0.0
    %66 = vadd.xlane.f32.xlu0 %v65
    %v67 = vpop.xlane.xlu0 %66
    %v68 = vsel %vm64, %v63, 0.0
    %69 = vadd.xlane.f32.xlu0 %v68
    %v70 = vpop.xlane.xlu0 %69
    %v71 = vmax.f32 %v67, 1e-24
    %v72 = vmax.f32 %v70, 1e-24
    %v73 = vrsqrt.pop %v71
    %v74 = vrsqrt.pop %v72
    %v75 = vmul.f32 %v73, 10.0
    %v76 = vmul.f32 %v74, 10.0
    %v77 = vmul.f32 %v56, %v75
    %v78 = vmul.f32 %v57, %v76
    %v79 = vmul.f32 %v58, %v58
    %v80 = vmul.f32 %v59, %v59
    %v81 = vsel %vm64, %v79, 0.0
    %82 = vadd.xlane.f32.xlu0 %v81
    %v83 = vpop.xlane.xlu0 %82
    %v84 = vsel %vm64, %v80, 0.0
    %85 = vadd.xlane.f32.xlu0 %v84
    %v86 = vpop.xlane.xlu0 %85
    %v87 = vmax.f32 %v83, 1e-24
    %v88 = vmax.f32 %v86, 1e-24
    %v89 = vrsqrt.pop %v87
    %v90 = vrsqrt.pop %v88
    %v91 = vmul.f32 %v58, %v89
    %v92 = vmul.f32 %v59, %v90
    %v93 = vmul.f32 %v60, %v60
    %v94 = vmul.f32 %v61, %v61
    %vm95 = vcmask 257024
    %v96 = vsel %vm95, %v93, 0.0
    %97 = vadd.xlane.f32.xlu0 %v96
    %v98 = vpop.xlane.xlu0 %97
    %v99 = vsel %vm95, %v94, 0.0
    %100 = vadd.xlane.f32.xlu0 %v99
    %v101 = vpop.xlane.xlu0 %100
    %v102 = vmax.f32 %v98, 1e-24
    %v103 = vmax.f32 %v101, 1e-24
    %v104 = vrsqrt.pop %v102
    %v105 = vrsqrt.pop %v103
    %v106 = vmul.f32 %v60, %v104
    %v107 = vmul.f32 %v61, %v105
    %v108 = vmul.f32 %v77, %v91
    %v109 = vmul.f32 %v78, %v92
    %v110 = vsel %vm64, %v108, 0.0
    %111 = vadd.xlane.f32.xlu0 %v110
    %v112 = vpop.xlane.xlu0 %111
    %v113 = vsel %vm64, %v109, 0.0
    %114 = vadd.xlane.f32.xlu0 %v113
    %v115 = vpop.xlane.xlu0 %114
    %v116 = vsub.f32 %v112, 10.0
    %v117 = vsub.f32 %v115, 10.0
    %v118 = vmul.f32 %v116, 1.442695
    %v119 = vpow.pop %v118
    %v120 = vmul.f32 %v117, 1.442695
    %v121 = vpow.pop %v120
    %v124 = vlaneseq
    %v125 = vand.u32 %v124, 127
    %v126 = vlaneseq
    %v127 = vshrl.u32 %v126, 7
    %v128 = vsub.s32 %v125, %v127
    %v129 = vrot.slane %v119, %v128
    %v130 = vlaneseq
    %v131 = vshrl.u32 %v130, 7
    %v132 = vsub.s32 %v125, %v131
    %v133 = vrot.slane %v121, %v132
    %vm134 = vcmask 1041409
    %v135 = vsel %vm134, %v133, %v129
    %vm137 = vcmask 58368
    %v138 = vsel %vm137, %v135, 0.0
    %139 = vadd.xlane.f32.xlu0 %v138
    %v140 = vpop.xlane.xlu0 %139
    %v141 = vlog2.pop %v140
    %v142 = vmul.f32 %v141, 0.6931472
    %v143 = vadd.f32 %v142, 10.0
    %v146 = vrot.slane %v112, 1
    %v147 = vsel %vm134, %v115, %v146
    %v149 = vsub.f32 %v143, %v147
    %vm150 = vcmask 1024
    %v151 = vsel %vm150, %v149, 0.0
    %152 = vadd.xlane.f32.xlu0 %v151
    %v153 = vpop.xlane.xlu0 %152
    %v154 = vrot.slane %v153, 4
    %v155 = vadd.f32 %v153, %v154
    %v156 = vrot.slane %v155, 2
    %v157 = vadd.f32 %v155, %v156
    %v158 = vrot.slane %v157, 1
    %v159 = vadd.f32 %v157, %v158
    %s160 = vtos %v159
    %v161 = vlaneseq
    %v162 = vshrl.u32 %v161, 7
    %v163 = vsub.s32 0, %v162
    %v164 = vrot.slane %v106, %v163
    %v165 = vlaneseq
    %v166 = vshrl.u32 %v165, 7
    %v167 = vsub.s32 0, %v166
    %v168 = vrot.slane %v107, %v167
    %v169 = vmul.f32 %v77, %v164
    %v170 = vmul.f32 %v78, %v168
    %v171 = vsel %vm64, %v169, 0.0
    %172 = vadd.xlane.f32.xlu0 %v171
    %v173 = vpop.xlane.xlu0 %172
    %v174 = vsel %vm64, %v170, 0.0
    %175 = vadd.xlane.f32.xlu0 %v174
    %v176 = vpop.xlane.xlu0 %175
    %v177 = vsub.f32 %v173, 10.0
    %v178 = vsub.f32 %v176, 10.0
    %v179 = vmul.f32 %v177, 1.442695
    %v180 = vpow.pop %v179
    %v181 = vmul.f32 %v178, 1.442695
    %v182 = vpow.pop %v181
    %v185 = vlaneseq
    %v186 = vshrl.u32 %v185, 7
    %v187 = vsub.s32 %v125, %v186
    %v188 = vrot.slane %v180, %v187
    %v189 = vlaneseq
    %v190 = vshrl.u32 %v189, 7
    %v191 = vsub.s32 %v125, %v190
    %v192 = vrot.slane %v182, %v191
    %v193 = vsel %vm134, %v192, %v188
    %v195 = vsel %vm137, %v193, 0.0
    %196 = vadd.xlane.f32.xlu0 %v195
    %v197 = vpop.xlane.xlu0 %196
    %v198 = vlog2.pop %v197
    %v199 = vmul.f32 %v198, 0.6931472
    %v200 = vadd.f32 %v199, 10.0
    %v203 = vrot.slane %v176, 7
    %v204 = vsel %vm134, %v203, %v173
    %v206 = vsub.f32 %v200, %v204
    %v207 = vsel %vm150, %v206, 0.0
    %208 = vadd.xlane.f32.xlu0 %v207
    %v209 = vpop.xlane.xlu0 %208
    %v210 = vrot.slane %v209, 4
    %v211 = vadd.f32 %v209, %v210
    %v212 = vrot.slane %v211, 2
    %v213 = vadd.f32 %v211, %v212
    %v214 = vrot.slane %v213, 1
    %v215 = vadd.f32 %v213, %v214
    %s216 = vtos %v215
    %s217 = sadd.f32 %s160, %s216
    %v218 = vlaneseq
    %v219 = vshrl.u32 %v218, 7
    %v220 = vsub.s32 1, %v219
    %v221 = vrot.slane %v106, %v220
    %v222 = vlaneseq
    %v223 = vshrl.u32 %v222, 7
    %v224 = vsub.s32 1, %v223
    %v225 = vrot.slane %v107, %v224
    %v226 = vmul.f32 %v77, %v221
    %v227 = vmul.f32 %v78, %v225
    %v228 = vsel %vm64, %v226, 0.0
    %229 = vadd.xlane.f32.xlu0 %v228
    %v230 = vpop.xlane.xlu0 %229
    %v231 = vsel %vm64, %v227, 0.0
    %232 = vadd.xlane.f32.xlu0 %v231
    %v233 = vpop.xlane.xlu0 %232
    %v234 = vsub.f32 %v230, 10.0
    %v235 = vsub.f32 %v233, 10.0
    %v236 = vmul.f32 %v234, 1.442695
    %v237 = vpow.pop %v236
    %v238 = vmul.f32 %v235, 1.442695
    %v239 = vpow.pop %v238
    %v242 = vlaneseq
    %v243 = vshrl.u32 %v242, 7
    %v244 = vsub.s32 %v125, %v243
    %v245 = vrot.slane %v237, %v244
    %v246 = vlaneseq
    %v247 = vshrl.u32 %v246, 7
    %v248 = vsub.s32 %v125, %v247
    %v249 = vrot.slane %v239, %v248
    %v250 = vsel %vm134, %v249, %v245
    %v252 = vsel %vm137, %v250, 0.0
    %253 = vadd.xlane.f32.xlu0 %v252
    %v254 = vpop.xlane.xlu0 %253
    %v255 = vlog2.pop %v254
    %v256 = vmul.f32 %v255, 0.6931472
    %v257 = vadd.f32 %v256, 10.0
    %v260 = vrot.slane %v233, 7
    %v261 = vsel %vm134, %v260, %v230
    %v263 = vsub.f32 %v257, %v261
    %v264 = vsel %vm150, %v263, 0.0
    %265 = vadd.xlane.f32.xlu0 %v264
    %v266 = vpop.xlane.xlu0 %265
    %v267 = vrot.slane %v266, 4
    %v268 = vadd.f32 %v266, %v267
    %v269 = vrot.slane %v268, 2
    %v270 = vadd.f32 %v268, %v269
    %v271 = vrot.slane %v270, 1
    %v272 = vadd.f32 %v270, %v271
    %s273 = vtos %v272
    %s274 = sadd.f32 %s217, %s273
    %v275 = vlaneseq
    %v276 = vshrl.u32 %v275, 7
    %v277 = vsub.s32 2, %v276
    %v278 = vrot.slane %v106, %v277
    %v279 = vlaneseq
    %v280 = vshrl.u32 %v279, 7
    %v281 = vsub.s32 2, %v280
    %v282 = vrot.slane %v107, %v281
    %v283 = vmul.f32 %v77, %v278
    %v284 = vmul.f32 %v78, %v282
    %v285 = vsel %vm64, %v283, 0.0
    %286 = vadd.xlane.f32.xlu0 %v285
    %v287 = vpop.xlane.xlu0 %286
    %v288 = vsel %vm64, %v284, 0.0
    %289 = vadd.xlane.f32.xlu0 %v288
    %v290 = vpop.xlane.xlu0 %289
    %v291 = vsub.f32 %v287, 10.0
    %v292 = vsub.f32 %v290, 10.0
    %v293 = vmul.f32 %v291, 1.442695
    %v294 = vpow.pop %v293
    %v295 = vmul.f32 %v292, 1.442695
    %v296 = vpow.pop %v295
    %v299 = vlaneseq
    %v300 = vshrl.u32 %v299, 7
    %v301 = vsub.s32 %v125, %v300
    %v302 = vrot.slane %v294, %v301
    %v303 = vlaneseq
    %v304 = vshrl.u32 %v303, 7
    %v305 = vsub.s32 %v125, %v304
    %v306 = vrot.slane %v296, %v305
    %v307 = vsel %vm134, %v306, %v302
    %v309 = vsel %vm137, %v307, 0.0
    %310 = vadd.xlane.f32.xlu0 %v309
    %v311 = vpop.xlane.xlu0 %310
    %v312 = vlog2.pop %v311
    %v313 = vmul.f32 %v312, 0.6931472
    %v314 = vadd.f32 %v313, 10.0
    %v317 = vrot.slane %v290, 7
    %v318 = vsel %vm134, %v317, %v287
    %v320 = vsub.f32 %v314, %v318
    %v321 = vsel %vm150, %v320, 0.0
    %322 = vadd.xlane.f32.xlu0 %v321
    %v323 = vpop.xlane.xlu0 %322
    %v324 = vrot.slane %v323, 4
    %v325 = vadd.f32 %v323, %v324
    %v326 = vrot.slane %v325, 2
    %v327 = vadd.f32 %v325, %v326
    %v328 = vrot.slane %v327, 1
    %v329 = vadd.f32 %v327, %v328
    %s330 = vtos %v329
    %s331 = sadd.f32 %s274, %s330
    %v332 = vlaneseq
    %v333 = vshrl.u32 %v332, 7
    %v334 = vsub.s32 3, %v333
    %v335 = vrot.slane %v106, %v334
    %v336 = vlaneseq
    %v337 = vshrl.u32 %v336, 7
    %v338 = vsub.s32 3, %v337
    %v339 = vrot.slane %v107, %v338
    %v340 = vmul.f32 %v77, %v335
    %v341 = vmul.f32 %v78, %v339
    %v342 = vsel %vm64, %v340, 0.0
    %343 = vadd.xlane.f32.xlu0 %v342
    %v344 = vpop.xlane.xlu0 %343
    %v345 = vsel %vm64, %v341, 0.0
    %346 = vadd.xlane.f32.xlu0 %v345
    %v347 = vpop.xlane.xlu0 %346
    %v348 = vsub.f32 %v344, 10.0
    %v349 = vsub.f32 %v347, 10.0
    %v350 = vmul.f32 %v348, 1.442695
    %v351 = vpow.pop %v350
    %v352 = vmul.f32 %v349, 1.442695
    %v353 = vpow.pop %v352
    %v356 = vlaneseq
    %v357 = vshrl.u32 %v356, 7
    %v358 = vsub.s32 %v125, %v357
    %v359 = vrot.slane %v351, %v358
    %v360 = vlaneseq
    %v361 = vshrl.u32 %v360, 7
    %v362 = vsub.s32 %v125, %v361
    %v363 = vrot.slane %v353, %v362
    %v364 = vsel %vm134, %v363, %v359
    %v366 = vsel %vm137, %v364, 0.0
    %367 = vadd.xlane.f32.xlu0 %v366
    %v368 = vpop.xlane.xlu0 %367
    %v369 = vlog2.pop %v368
    %v370 = vmul.f32 %v369, 0.6931472
    %v371 = vadd.f32 %v370, 10.0
    %v374 = vrot.slane %v347, 7
    %v375 = vsel %vm134, %v374, %v344
    %v377 = vsub.f32 %v371, %v375
    %v378 = vsel %vm150, %v377, 0.0
    %379 = vadd.xlane.f32.xlu0 %v378
    %v380 = vpop.xlane.xlu0 %379
    %v381 = vrot.slane %v380, 4
    %v382 = vadd.f32 %v380, %v381
    %v383 = vrot.slane %v382, 2
    %v384 = vadd.f32 %v382, %v383
    %v385 = vrot.slane %v384, 1
    %v386 = vadd.f32 %v384, %v385
    %s387 = vtos %v386
    %s388 = sadd.f32 %s331, %s387
    %s389 = smul.f32 %s388, 0.2
    %v390 = vrcp.pop 10.0
    %s391 = vtos %v390
    %s392 = smul.f32 %s389, %s391
    %s393 = scalar_lea.smem [#allocation8], 0
    %394 = sst [smem:[%s393]] %s392
    // Predicated region
    $region26: #{tpu_custom_call.1} parent=1 // pred_check
      _
    $region27: #{tpu_custom_call.1} parent=1 // pred_check_branch
      %396 = sbr.rel (0) target = $region29
    $region28: #{tpu_custom_call.1} parent=1 // pred_region
      %s398 = ssub.s32 16, 16
      %399 = vsyncadd [#allocation4], %s398
      %402 = dma.smem_to_hbm [#allocation8], 16, %s3, [#allocation4]
    $region29: #{tpu_custom_call.1} parent=1 // pred_fallthru
      _
    // Predicated region
    $region30: #{tpu_custom_call.1} parent=1 // pred_check
      _
    $region31: #{tpu_custom_call.1} parent=1 // pred_check_branch
      %404 = sbr.rel (0) target = $region33
    $region32: #{tpu_custom_call.1} parent=1 // pred_region
      %405 = dma.done [#allocation4], 16
    $region33: #{tpu_custom_call.1} parent=1 // pred_fallthru
      _
    %406 = sfence
    %407 = vsyncpa [#allocation3], 1
    %408 = vsyncpa [#allocation6], 1
    %409 = vsyncpa [#allocation4], 1

</llo_original>
